<compile_context>
chip_gen: v7x
topology: tpu7x:2x2x1
jax: 0.10.0
libtpu: 0.0.40
codegen_flags: <defaults>
</compile_context>

<pallas_src>
import functools

import jax
import jax.numpy as jnp
from jax.experimental import pallas as pl
from jax.experimental.pallas import tpu as pltpu

_NEG_INF = -1e30  # padded class lanes act as -inf logits (exp -> exactly 0)


def _round_up(x: int, m: int) -> int:
    return (x + m - 1) // m * m


def _classifier_kernel(x_ref, wt_ref, b_ref, o_ref):
    """Linear + bias + numerically stable log-softmax over the class (lane) axis.

    x_ref:  (TILE_M, z_dim)  stream_dtype (streams over the batch)
    wt_ref: (z_dim,  O_pad)  stream_dtype (resident across the whole grid)
    b_ref:  (1,      O_pad)  f32          (resident; padded lanes = -1e30)
    o_ref:  (TILE_M, O_pad)  f32
    """
    logits = jnp.dot(x_ref[...], wt_ref[...],
                     preferred_element_type=jnp.float32) + b_ref[...]
    m = jnp.max(logits, axis=-1, keepdims=True)
    shifted = logits - m
    lse = jnp.log(jnp.sum(jnp.exp(shifted), axis=-1, keepdims=True))
    o_ref[...] = (shifted - lse).astype(o_ref.dtype)


def prepare_classifier_params(weight, bias, *, stream_dtype=jnp.float32):
    """One-time model-setup step (NOT per forward call).

    weight: (output_dim, z_dim)  PyTorch nn.Linear convention
    bias:   (output_dim,)

    Returns (wt_padded, b_padded):
      wt_padded: (z_dim, O_pad) -- weight.T with only the class dim padded to a
                 multiple of 128 (padding = 0, numerically exact).  The
                 contraction dim is left at z_dim (full-array-dim block).
      b_padded:  (1, O_pad) f32 -- real bias in the first output_dim lanes,
                 -1e30 in padded lanes so they behave as -inf logits.
    """
    output_dim, z_dim = weight.shape
    o_pad = _round_up(output_dim, 128)

    wt = jnp.zeros((z_dim, o_pad), dtype=stream_dtype)
    wt = wt.at[:, :output_dim].set(weight.T.astype(stream_dtype))

    b2 = jnp.full((1, o_pad), _NEG_INF, dtype=jnp.float32)
    b2 = b2.at[0, :output_dim].set(bias.astype(jnp.float32))
    return wt, b2


def _choose_tile_m(n: int, tile_m: int) -> int:
    # Cap at the (sublane-rounded) batch so tiny batches stay a single block.
    tm = min(tile_m, _round_up(n, 8))
    # v7x megacore: give the ("parallel",) grid axis at least 2 steps whenever
    # the batch is big enough to split, so both TensorCores get work.
    # (No effect on single-TC v5e/v6e beyond a slightly smaller tile.)
    if n > 8:
        tm = min(tm, max(8, _round_up(pl.cdiv(n, 2), 8)))
    return tm


@functools.partial(jax.jit,
                   static_argnames=("output_dim", "tile_m", "trim_output"))
def classifier_forward(x, wt_padded, b_padded, *, output_dim,
                       tile_m=2048, trim_output=True):
    """Pallas forward pass: log_softmax(x @ W.T + b, axis=1).

    x:         (N, z_dim)
    wt_padded: (z_dim, O_pad)  from prepare_classifier_params
    b_padded:  (1, O_pad)      from prepare_classifier_params
    returns    (N, output_dim) f32 log-probabilities
               (or the padded (N, O_pad) block if trim_output=False)
    """
    n, z_dim = x.shape
    k_w, o_pad = wt_padded.shape
    assert k_w == z_dim, "weight/activation z_dim mismatch"

    # Match the streaming dtype of the prepared weight (f32 by default,
    # optionally bf16); accumulation in the kernel is always f32.
    x = x.astype(wt_padded.dtype)

    tm = _choose_tile_m(n, tile_m)
    grid = (pl.cdiv(n, tm),)

    itemsize = jnp.dtype(wt_padded.dtype).itemsize
    cost = pl.CostEstimate(
        flops=2 * n * z_dim * o_pad,
        transcendentals=n * o_pad,                       # exp in the softmax
        bytes_accessed=itemsize * (n * z_dim + z_dim * o_pad)
                       + 4 * (o_pad + n * o_pad),
    )

    out = pl.pallas_call(
        _classifier_kernel,
        out_shape=jax.ShapeDtypeStruct((n, o_pad), jnp.float32),
        grid=grid,
        in_specs=[
            # x streams over the batch; full z_dim block -> no wrapper padding.
            pl.BlockSpec((tm, z_dim), lambda i: (i, 0)),
            # Weight / bias pinned at block (0,0): VMEM-resident across grid.
            pl.BlockSpec((z_dim, o_pad), lambda i: (0, 0)),
            pl.BlockSpec((1, o_pad), lambda i: (0, 0)),
        ],
        out_specs=pl.BlockSpec((tm, o_pad), lambda i: (i, 0)),
        compiler_params=pltpu.CompilerParams(
            dimension_semantics=("parallel",)),          # megacore on v7x
        cost_estimate=cost,
    )(x, wt_padded, b_padded)

    if trim_output:
        out = out[:, :output_dim]
    return out


def _reference(x, weight, bias):
    logits = x @ weight.T + bias
    return jax.nn.log_softmax(logits, axis=1)


if __name__ == "__main__":
    # Module-consistent small shapes: z_dim=335, output_dim=10 (defaults), batch=8
    batch, z_dim, output_dim = 8, 335, 10

    key = jax.random.PRNGKey(0)
    kx, kw, kb = jax.random.split(key, 3)

    x = jax.random.normal(kx, (batch, z_dim), dtype=jnp.float32)
    # Deterministic synthetic parameters (PyTorch nn.Linear shapes)
    weight = jax.random.normal(kw, (output_dim, z_dim), dtype=jnp.float32) * 0.1
    bias = jax.random.normal(kb, (output_dim,), dtype=jnp.float32) * 0.1

    # One-time parameter prep (transpose + class-dim pad happens once).
    wt_padded, b_padded = prepare_classifier_params(weight, bias)

    y = classifier_forward(x, wt_padded, b_padded, output_dim=output_dim)
    y = jax.block_until_ready(y)

    y_ref = _reference(x, weight, bias)
    assert y.shape == (batch, output_dim)
    assert jnp.allclose(y, y_ref, atol=1e-5, rtol=1e-5), "mismatch vs reference"

    print("KERNEL_OK")
</pallas_src>

<mosaic_0001>
module attributes {stable_mosaic.version = 11 : i64} {
  func.func @_classifier_kernel(%arg0: i32, %arg1: memref<8x335xf32, #tpu.memory_space<vmem>>, %arg2: memref<335x128xf32, #tpu.memory_space<vmem>>, %arg3: memref<1x128xf32, #tpu.memory_space<vmem>>, %arg4: memref<8x128xf32, #tpu.memory_space<vmem>>) attributes {dimension_semantics = [#tpu.dimension_semantics<parallel>], iteration_bounds = array<i64: 1>, scalar_prefetch = 0 : i64, scratch_operands = 0 : i64, tpu.core_type = #tpu.core_type<tc>, window_params = [{transform_indices = @transform_0, window_bounds = array<i64: 8, 335>}, {pipeline_mode = #tpu.pipeline_mode<synchronous>, transform_indices = @transform_1, window_bounds = array<i64: 335, 128>}, {pipeline_mode = #tpu.pipeline_mode<synchronous>, transform_indices = @transform_2, window_bounds = array<i64: 1, 128>}, {transform_indices = @transform_3, window_bounds = array<i64: 8, 128>}]} {
    %c0 = arith.constant 0 : index
    %c0_0 = arith.constant 0 : index
    %0 = vector.load %arg1[%c0, %c0_0] : memref<8x335xf32, #tpu.memory_space<vmem>>, vector<8x335xf32>
    %c0_1 = arith.constant 0 : index
    %c0_2 = arith.constant 0 : index
    %1 = vector.load %arg2[%c0_1, %c0_2] : memref<335x128xf32, #tpu.memory_space<vmem>>, vector<335x128xf32>
    %cst = arith.constant dense<0.000000e+00> : vector<8x128xf32>
    %2 = tpu.matmul %0, %1, %cst {dimension_numbers = #tpu.dot_dimension_numbers<[1], [0], [0], [1], [0, 0, 1, 1], [], []>} : vector<8x335xf32>, vector<335x128xf32>, vector<8x128xf32> -> vector<8x128xf32>
    %c0_3 = arith.constant 0 : index
    %c0_4 = arith.constant 0 : index
    %3 = vector.load %arg3[%c0_3, %c0_4] : memref<1x128xf32, #tpu.memory_space<vmem>>, vector<1x128xf32>
    %4 = vector.broadcast %3 : vector<1x128xf32> to vector<8x128xf32>
    %5 = arith.addf %2, %4 : vector<8x128xf32>
    %cst_5 = arith.constant dense<0xFF800000> : vector<8xf32>
    %6 = vector.multi_reduction <maximumf>, %5, %cst_5 [1] : vector<8x128xf32> to vector<8xf32>
    %7 = vector.shape_cast %6 : vector<8xf32> to vector<8x1xf32>
    %8 = vector.broadcast %7 : vector<8x1xf32> to vector<8x128xf32>
    %9 = arith.subf %5, %8 : vector<8x128xf32>
    %10 = math.exp %9 : vector<8x128xf32>
    %cst_6 = arith.constant dense<0.000000e+00> : vector<8xf32>
    %11 = vector.multi_reduction <add>, %10, %cst_6 [1] : vector<8x128xf32> to vector<8xf32>
    %12 = vector.shape_cast %11 : vector<8xf32> to vector<8x1xf32>
    %13 = math.log %12 : vector<8x1xf32>
    %14 = vector.broadcast %13 : vector<8x1xf32> to vector<8x128xf32>
    %15 = arith.subf %9, %14 : vector<8x128xf32>
    %c0_7 = arith.constant 0 : index
    %c0_8 = arith.constant 0 : index
    %16 = vector.load %arg4[%c0_7, %c0_8] : memref<8x128xf32, #tpu.memory_space<vmem>>, vector<8x128xf32>
    tpu.vector_store %arg4[%c0_7, %c0_8], %15 {strides = array<i32>} : memref<8x128xf32, #tpu.memory_space<vmem>>, vector<8x128xf32>,
    return
  }
  func.func @transform_0(%arg0: i32) -> (i32, i32) {
    %c0_i32 = arith.constant 0 : i32
    %c0_i32_0 = arith.constant 0 : i32
    return %arg0, %c0_i32 : i32, i32
  }
  func.func @transform_1(%arg0: i32) -> (i32, i32) {
    %c0_i32 = arith.constant 0 : i32
    %c0_i32_0 = arith.constant 0 : i32
    %c0_i32_1 = arith.constant 0 : i32
    return %c0_i32, %c0_i32_0 : i32, i32
  }
  func.func @transform_2(%arg0: i32) -> (i32, i32) {
    %c0_i32 = arith.constant 0 : i32
    %c0_i32_0 = arith.constant 0 : i32
    %c0_i32_1 = arith.constant 0 : i32
    return %c0_i32, %c0_i32_0 : i32, i32
  }
  func.func @transform_3(%arg0: i32) -> (i32, i32) {
    %c0_i32 = arith.constant 0 : i32
    %c0_i32_0 = arith.constant 0 : i32
    return %arg0, %c0_i32 : i32, i32
  }
}

</mosaic_0001>

<llo_original>
// kernel: classifier_forward.1
$region0: #{classifier_forward.1}
  #allocation0 [shape = 'u32[]', space=smem, size = 0x4, offset = 0x4, fixed_abs, tag = 'smem constant byte address 0x4 - core index']
  #allocation1 [shape = 'u32[144,128]{1,0:T(1,128)}', space=vmem, size = 0x12000, scoped, tag = 'internal scratch']
  %s0 = inlined_call_operand.hbm [shape: f32[8,335], index: 0, kind: input, shape index: {}]
  %s1 = inlined_call_operand.hbm [shape: f32[335,128], index: 1, kind: input, shape index: {}]
  %s2 = inlined_call_operand.vmem [shape: f32[1,128], index: 2, kind: input, shape index: {}]
  %s3 = inlined_call_operand.hbm [shape: f32[8,128], index: 3, kind: output, shape index: {}]
  %s4 = sld [smem:[#allocation0]]
  $region30: #{classifier_forward.1} parent=0
    _
  %s6 = ssub.s32 1, %s4
  %s7 = scalar_select 0, %s6, %s4
  $region1: #{classifier_forward.1} parent=0
    #allocation2 [shape = 'u8[12288]{0}', space=vmem, size = 0x3000, scoped, tag = 'input window, operand 0, single buffered']
    #allocation3 [shape = 's32[1]{0}', space=sflag, size = 0x4, scoped, tag = 'scoped memory for classifier_forward.1']
    #allocation4 [shape = 's32[1]{0}', space=sflag, size = 0x4, scoped, tag = 'scoped memory for classifier_forward.1']
    #allocation5 [shape = 'u8[172032]{0}', space=vmem, size = 0x2a000, scoped, tag = 'input window, operand 1, single buffered']
    #allocation6 [shape = 's32[1]{0}', space=sflag, size = 0x4, scoped, tag = 'scoped memory for classifier_forward.1']
    #allocation7 [shape = 'u8[4096]{0}', space=vmem, size = 0x1000, scoped, tag = 'output window, operand 0, single buffered']
    %8 = vsyncpa [#allocation3], 0
    %9 = vsyncpa [#allocation6], 0
    %10 = vsyncpa [#allocation4], 0
    // Predicated region
    $region2: #{classifier_forward.1} parent=1 // pred_check
      _
    $region3: #{classifier_forward.1} parent=1 // pred_check_branch
      %12 = sbr.rel (0) target = $region5
    $region4: #{classifier_forward.1} parent=1 // pred_region
      %s14 = ssub.s32 384, 384
      %15 = vsyncadd [#allocation3], %s14
      %s17 = sshll.u32 [#allocation2], 4
      %s18 = int_to_ptr.vmem [resolvable:$true] %s17
      %20 = dma.hbm_to_vmem [thread:$0]  %s0, 384, %s18, [#allocation3]
    $region5: #{classifier_forward.1} parent=1 // pred_fallthru
      _
    // Predicated region
    $region6: #{classifier_forward.1} parent=1 // pred_check
      _
    $region7: #{classifier_forward.1} parent=1 // pred_check_branch
      %22 = sbr.rel (0) target = $region9
    $region8: #{classifier_forward.1} parent=1 // pred_region
      %s24 = ssub.s32 5376, 5376
      %25 = vsyncadd [#allocation6], %s24
      %s26 = sshll.u32 [#allocation5], 4
      %s27 = int_to_ptr.vmem [resolvable:$true] %s26
      %32 = dma.hbm_to_vmem [thread:$0]  %s1, 5376, %s27, [#allocation6], 128, 128, 8
    $region9: #{classifier_forward.1} parent=1 // pred_fallthru
      _
    // Predicated region
    $region10: #{classifier_forward.1} parent=1 // pred_check
      _
    $region11: #{classifier_forward.1} parent=1 // pred_check_branch
      %34 = sbr.rel (0) target = $region13
    $region12: #{classifier_forward.1} parent=1 // pred_region
      _
    $region13: #{classifier_forward.1} parent=1 // pred_fallthru
      _
    // Predicated region
    $region14: #{classifier_forward.1} parent=1 // pred_check
      _
    $region15: #{classifier_forward.1} parent=1 // pred_check_branch
      %36 = sbr.rel (0) target = $region17
    $region16: #{classifier_forward.1} parent=1 // pred_region
      %37 = dma.done [#allocation3], 384
    $region17: #{classifier_forward.1} parent=1 // pred_fallthru
      _
    // Predicated region
    $region18: #{classifier_forward.1} parent=1 // pred_check
      _
    $region19: #{classifier_forward.1} parent=1 // pred_check_branch
      %39 = sbr.rel (0) target = $region21
    $region20: #{classifier_forward.1} parent=1 // pred_region
      %40 = dma.done [#allocation6], 5376
    $region21: #{classifier_forward.1} parent=1 // pred_fallthru
      _
    %v41 = vld [vmem:[#allocation2] sm:$0xff]
    %v42 = vld [vmem:[#allocation2 + $0x8] sm:$0xff]
    %v43 = vld [vmem:[#allocation2 + $0x10] sm:$0xff]
    %v44 = vld [vmem:[#allocation5] sm:$0xff]
    %v45 = vld [vmem:[#allocation5 + $0x8] sm:$0xff]
    %v46 = vld [vmem:[#allocation5 + $0x10] sm:$0xff]
    %v47 = vld [vmem:[#allocation5 + $0x18] sm:$0xff]
    %v48 = vld [vmem:[#allocation5 + $0x20] sm:$0xff]
    %v49 = vld [vmem:[#allocation5 + $0x28] sm:$0xff]
    %v50 = vld [vmem:[#allocation5 + $0x30] sm:$0xff]
    %v51 = vld [vmem:[#allocation5 + $0x38] sm:$0xff]
    %v52 = vld [vmem:[#allocation5 + $0x40] sm:$0xff]
    %v53 = vld [vmem:[#allocation5 + $0x48] sm:$0xff]
    %v54 = vld [vmem:[#allocation5 + $0x50] sm:$0xff]
    %v55 = vld [vmem:[#allocation5 + $0x58] sm:$0xff]
    %v56 = vld [vmem:[#allocation5 + $0x60] sm:$0xff]
    %v57 = vld [vmem:[#allocation5 + $0x68] sm:$0xff]
    %v58 = vld [vmem:[#allocation5 + $0x70] sm:$0xff]
    %v59 = vld [vmem:[#allocation5 + $0x78] sm:$0xff]
    %v60 = vld [vmem:[#allocation5 + $0x80] sm:$0xff]
    %v61 = vld [vmem:[#allocation5 + $0x88] sm:$0xff]
    %v62 = vld [vmem:[#allocation5 + $0x90] sm:$0xff]
    %v63 = vld [vmem:[#allocation5 + $0x98] sm:$0xff]
    %v64 = vld [vmem:[#allocation5 + $0xa0] sm:$0xff]
    %v65 = vld [vmem:[#allocation5 + $0xa8] sm:$0xff]
    %v66 = vld [vmem:[#allocation5 + $0xb0] sm:$0xff]
    %v67 = vld [vmem:[#allocation5 + $0xb8] sm:$0xff]
    %v68 = vld [vmem:[#allocation5 + $0xc0] sm:$0xff]
    %v69 = vld [vmem:[#allocation5 + $0xc8] sm:$0xff]
    %v70 = vld [vmem:[#allocation5 + $0xd0] sm:$0xff]
    %v71 = vld [vmem:[#allocation5 + $0xd8] sm:$0xff]
    %v72 = vld [vmem:[#allocation5 + $0xe0] sm:$0xff]
    %v73 = vld [vmem:[#allocation5 + $0xe8] sm:$0xff]
    %v74 = vld [vmem:[#allocation5 + $0xf0] sm:$0xff]
    %v75 = vld [vmem:[#allocation5 + $0xf8] sm:$0xff]
    %v76 = vld [vmem:[#allocation5 + $0x100] sm:$0xff]
    %v77 = vld [vmem:[#allocation5 + $0x108] sm:$0xff]
    %v78 = vld [vmem:[#allocation5 + $0x110] sm:$0xff]
    %v79 = vld [vmem:[#allocation5 + $0x118] sm:$0xff]
    %v80 = vld [vmem:[#allocation5 + $0x120] sm:$0xff]
    %v81 = vld [vmem:[#allocation5 + $0x128] sm:$0xff]
    %v82 = vld [vmem:[#allocation5 + $0x130] sm:$0xff]
    %v83 = vld [vmem:[#allocation5 + $0x138] sm:$0xff]
    %v84 = vld [vmem:[#allocation5 + $0x140] sm:$0xff]
    %v85 = vld [vmem:[#allocation5 + $0x148] sm:$0x7f]
    %v86 = vld [vmem:[%s2] sm:$0x1]
    %v88 = vlaneseq
    %v89 = vshrl.u32 %v88, 7
    %v90 = vsub.s32 0, %v89
    %v91 = vrot.slane %v86, %v90
    %vm93 = vcmask 646144
    %v95 = vsel %vm93, %v43, 0
    %vm97 = vcmask 1046528
    %v99 = vsel %vm97, %v85, 0
    %101 = vmatprep.subr.mxu0 0.0
    %102 = vmatpush1.msra.mxu0 %v44
    %103 = vmatprep.subr.mxu0 0.0
    %104 = vmatpush1.msra.mxu0 %v45
    %105 = vmatprep.subr.mxu0 0.0
    %106 = vmatpush1.msra.mxu0 %v46
    %107 = vmatprep.subr.mxu0 0.0
    %108 = vmatpush1.msra.mxu0 %v47
    %109 = vmatprep.subr.mxu0 0.0
    %110 = vmatpush1.msra.mxu0 %v48
    %111 = vmatprep.subr.mxu0 0.0
    %112 = vmatpush1.msra.mxu0 %v49
    %113 = vmatprep.subr.mxu0 0.0
    %114 = vmatpush1.msra.mxu0 %v50
    %115 = vmatprep.subr.mxu0 0.0
    %116 = vmatpush1.msra.mxu0 %v51
    %117 = vmatprep.subr.mxu0 0.0
    %118 = vmatpush1.msra.mxu0 %v52
    %119 = vmatprep.subr.mxu0 0.0
    %120 = vmatpush1.msra.mxu0 %v53
    %121 = vmatprep.subr.mxu0 0.0
    %122 = vmatpush1.msra.mxu0 %v54
    %123 = vmatprep.subr.mxu0 0.0
    %124 = vmatpush1.msra.mxu0 %v55
    %125 = vmatprep.subr.mxu0 0.0
    %126 = vmatpush1.msra.mxu0 %v56
    %127 = vmatprep.subr.mxu0 0.0
    %128 = vmatpush1.msra.mxu0 %v57
    %129 = vmatprep.subr.mxu0 0.0
    %130 = vmatpush1.msra.mxu0 %v58
    %131 = vmatprep.subr.mxu0 0.0
    %132 = vmatpush1.msra.mxu0 %v59
    %133 = vmatprep.subr.mxu0 0.0
    %134 = vmatpush1.msra.mxu0 %v60
    %135 = vmatprep.subr.mxu0 0.0
    %136 = vmatpush1.msra.mxu0 %v61
    %137 = vmatprep.subr.mxu0 0.0
    %138 = vmatpush1.msra.mxu0 %v62
    %139 = vmatprep.subr.mxu0 0.0
    %140 = vmatpush1.msra.mxu0 %v63
    %141 = vmatprep.subr.mxu0 0.0
    %142 = vmatpush1.msra.mxu0 %v64
    %143 = vmatprep.subr.mxu0 0.0
    %144 = vmatpush1.msra.mxu0 %v65
    %145 = vmatprep.subr.mxu0 0.0
    %146 = vmatpush1.msra.mxu0 %v66
    %147 = vmatprep.subr.mxu0 0.0
    %148 = vmatpush1.msra.mxu0 %v67
    %149 = vmatprep.subr.mxu0 0.0
    %150 = vmatpush1.msra.mxu0 %v68
    %151 = vmatprep.subr.mxu0 0.0
    %152 = vmatpush1.msra.mxu0 %v69
    %153 = vmatprep.subr.mxu0 0.0
    %154 = vmatpush1.msra.mxu0 %v70
    %155 = vmatprep.subr.mxu0 0.0
    %156 = vmatpush1.msra.mxu0 %v71
    %157 = vmatprep.subr.mxu0 0.0
    %158 = vmatpush1.msra.mxu0 %v72
    %159 = vmatprep.subr.mxu0 0.0
    %160 = vmatpush1.msra.mxu0 %v73
    %161 = vmatprep.subr.mxu0 0.0
    %162 = vmatpush1.msra.mxu0 %v74
    %163 = vmatprep.subr.mxu0 0.0
    %164 = vmatpush1.msra.mxu0 %v75
    %165 = vmatprep.mubr.f32.mxu0 %v42
    %166 = vmatmul.mubr.f32.gmra.mrb[0].mxu0 %v41
    %v167 = vpop.f32.mrb[0].mxu0
    %v168 = vadd.f32 %v91, %v167
    %v169 = vpop.f32.mrb[0].mxu0
    %170 = vdwg.mxu0
    %171 = vmatprep.subr.mxu0 0.0
    %172 = vmatpush1.msra.mxu0 %v76
    %173 = vmatprep.subr.mxu0 0.0
    %174 = vmatpush1.msra.mxu0 %v77
    %175 = vmatprep.subr.mxu0 0.0
    %176 = vmatpush1.msra.mxu0 %v78
    %177 = vmatprep.subr.mxu0 0.0
    %178 = vmatpush1.msra.mxu0 %v79
    %179 = vmatprep.subr.mxu0 0.0
    %180 = vmatpush1.msra.mxu0 %v80
    %181 = vmatprep.subr.mxu0 0.0
    %182 = vmatpush1.msra.mxu0 %v81
    %183 = vmatprep.subr.mxu0 0.0
    %184 = vmatpush1.msra.mxu0 %v82
    %185 = vmatprep.subr.mxu0 0.0
    %186 = vmatpush1.msra.mxu0 %v83
    %187 = vmatprep.subr.mxu0 0.0
    %188 = vmatpush1.msra.mxu0 %v84
    %189 = vmatprep.subr.mxu0 0.0
    %190 = vmatpush1.msra.mxu0 %v99
    %191 = vmatprep.subr.mxu0 0.0
    %192 = vmatpush1.msra.mxu0 0.0
    %193 = vmatprep.subr.mxu0 0.0
    %194 = vmatpush1.msra.mxu0 0.0
    %195 = vmatprep.subr.mxu0 0.0
    %196 = vmatpush1.msra.mxu0 0.0
    %197 = vmatprep.subr.mxu0 0.0
    %198 = vmatpush1.msra.mxu0 0.0
    %199 = vmatprep.subr.mxu0 0.0
    %200 = vmatpush1.msra.mxu0 0.0
    %201 = vmatprep.subr.mxu0 0.0
    %202 = vmatpush1.msra.mxu0 0.0
    %203 = vmatprep.subr.mxu0 0.0
    %204 = vmatpush1.msra.mxu0 0.0
    %205 = vmatprep.subr.mxu0 0.0
    %206 = vmatpush1.msra.mxu0 0.0
    %207 = vmatprep.subr.mxu0 0.0
    %208 = vmatpush1.msra.mxu0 0.0
    %209 = vmatprep.subr.mxu0 0.0
    %210 = vmatpush1.msra.mxu0 0.0
    %211 = vmatprep.subr.mxu0 0.0
    %212 = vmatpush1.msra.mxu0 0.0
    %213 = vmatprep.subr.mxu0 0.0
    %214 = vmatpush1.msra.mxu0 0.0
    %215 = vmatprep.subr.mxu0 0.0
    %216 = vmatpush1.msra.mxu0 0.0
    %217 = vmatprep.subr.mxu0 0.0
    %218 = vmatpush1.msra.mxu0 0.0
    %219 = vmatprep.subr.mxu0 0.0
    %220 = vmatpush1.msra.mxu0 0.0
    %221 = vmatprep.subr.mxu0 0.0
    %222 = vmatpush1.msra.mxu0 0.0
    %223 = vmatprep.subr.mxu0 0.0
    %224 = vmatpush1.msra.mxu0 0.0
    %225 = vmatprep.subr.mxu0 0.0
    %226 = vmatpush1.msra.mxu0 0.0
    %227 = vmatprep.subr.mxu0 0.0
    %228 = vmatpush1.msra.mxu0 0.0
    %229 = vmatprep.subr.mxu0 0.0
    %230 = vmatpush1.msra.mxu0 0.0
    %231 = vmatprep.subr.mxu0 0.0
    %232 = vmatpush1.msra.mxu0 0.0
    %233 = vmatprep.subr.mxu0 0.0
    %234 = vmatpush1.msra.mxu0 0.0
    %235 = vmatprep.mubr.f32.mxu0 0.0
    %236 = vmatmul.mubr.f32.gmra.mrb[0].mxu0 %v95
    %v237 = vpop.f32.mrb[0].mxu0
    %v238 = vadd.f32 %v168, %v237
    %v239 = vpop.f32.mrb[0].mxu0
    %240 = vdwg.mxu0
    %241 = vmax.xlane.f32.xlu0 %v238
    %v242 = vpop.xlane.xlu0 %241
    %v243 = vsub.f32 %v238, %v242
    %v244 = vmul.f32 %v243, 1.442695
    %v245 = vpow.pop %v244
    %246 = vadd.xlane.f32.xlu0 %v245
    %v247 = vpop.xlane.xlu0 %246
    %v248 = vlog2.pop %v247
    %v249 = vmul.f32 %v248, 0.6931472
    %v250 = vsub.f32 %v243, %v249
    %251 = vst [vmem:[#allocation7] sm:$0xff] %v250
    // Predicated region
    $region22: #{classifier_forward.1} parent=1 // pred_check
      _
    $region23: #{classifier_forward.1} parent=1 // pred_check_branch
      %253 = sbr.rel (0) target = $region25
    $region24: #{classifier_forward.1} parent=1 // pred_region
      %s255 = ssub.s32 128, 128
      %256 = vsyncadd [#allocation4], %s255
      %s258 = sshll.u32 [#allocation7], 4
      %s259 = int_to_ptr.vmem [resolvable:$true] %s258
      %261 = dma.vmem_to_hbm [thread:$0]  %s259, 128, %s3, [#allocation4]
    $region25: #{classifier_forward.1} parent=1 // pred_fallthru
      _
    // Predicated region
    $region26: #{classifier_forward.1} parent=1 // pred_check
      _
    $region27: #{classifier_forward.1} parent=1 // pred_check_branch
      %263 = sbr.rel (0) target = $region29
    $region28: #{classifier_forward.1} parent=1 // pred_region
      %264 = dma.done [#allocation4], 128
    $region29: #{classifier_forward.1} parent=1 // pred_fallthru
      _
    %265 = vsyncpa [#allocation3], 1
    %266 = vsyncpa [#allocation6], 1
    %267 = vsyncpa [#allocation4], 1

</llo_original>
